<compile_context>
chip_gen: v5e
topology: v5e:2x2
jax: 0.10.0
libtpu: 0.0.40
codegen_flags: <defaults>
</compile_context>

<pallas_src>
import jax
import jax.numpy as jnp
from jax.experimental import pallas as pl
from jax.experimental.pallas import tpu as pltpu

_DEFAULT_TILE_B = 8192  # big tiles amortize per-step overhead; capped below.


def _round_up(n, m):
    return ((n + m - 1) // m) * m


def _mlp_kernel(x_ref,
                w1_ref, b1_ref,
                w2_ref, b2_ref,
                w3_ref, b3_ref,
                w4_ref, b4_ref,
                o_ref):
    """One batch tile of the MLP, fully resident in VMEM.

    x_ref         : [tile_b, 128] f32   (cast to bf16 in-kernel for the MXU)
    w1/w2/w3_ref  : [in, out]     bf16  (MXU operands)
    b1..b4_ref    : [1, out]      f32   (bias/ReLU kept f32: v5e VPU has no bf16)
    w4_ref        : [1, 16]       f32   (final layer done on VPU, not MXU)
    o_ref         : [tile_b, 1]   f32
    """
    f32 = jnp.float32
    bf16 = jnp.bfloat16

    # Layer 1: cast the f32 tile to bf16 right at the MXU feed (VPU work hidden
    # under the x DMA); f32 accumulation, f32 bias + ReLU.
    h = jnp.dot(x_ref[...].astype(bf16), w1_ref[...], preferred_element_type=f32)
    h = jnp.maximum(h + b1_ref[...], 0.0)

    h = jnp.dot(h.astype(bf16), w2_ref[...], preferred_element_type=f32)
    h = jnp.maximum(h + b2_ref[...], 0.0)

    h = jnp.dot(h.astype(bf16), w3_ref[...], preferred_element_type=f32)
    h = jnp.maximum(h + b3_ref[...], 0.0)

    # Layer 4 (K=16, N=1): VPU multiply + lane reduction (an MXU matmul would
    # burn a full weight push/pop for one useful output lane).
    out = jnp.sum(h * w4_ref[...], axis=-1, keepdims=True) + b4_ref[...]

    o_ref[...] = out.astype(o_ref.dtype)


def _const_spec(shape):
    # Full-array block, same tile every grid step (weights / biases).
    return pl.BlockSpec(shape, lambda i: (0,) * len(shape))


def regressor_forward(x, params, *, tile_b=None):
    """Forward pass of the Regressor MLP.

    x      : [B, 128] float32 (or bfloat16)
    params : dict with w1..w4 stored [in, out] (float32), b1..b4 [1, out] (float32)
    returns: [B, 1] float32

    Note: MXU feeds are bf16 with f32 accumulation (deliberate precision
    tradeoff vs. the pure-f32 PyTorch forward).
    """
    B, D = x.shape
    assert D == 128, D

    if tile_b is None:
        # Large tiles to amortize per-step overhead, but keep >= ~4 grid steps
        # when B is large enough (v7x megacore sharding + DMA/compute overlap).
        tile_b = min(_DEFAULT_TILE_B, _round_up(pl.cdiv(B, 4), 8))
    tile_b = max(8, _round_up(tile_b, 8))
    tile_b = min(tile_b, _round_up(B, 8))

    # No padding: Pallas handles the partial last block (rows are independent,
    # OOB output writes are discarded).
    grid = (pl.cdiv(B, tile_b),)

    # Weights are tiny: cast to bf16 once in the wrapper. x stays f32 — the
    # per-tile cast happens inside the kernel.
    x = x.astype(jnp.float32)
    w1 = params["w1"].astype(jnp.bfloat16)
    w2 = params["w2"].astype(jnp.bfloat16)
    w3 = params["w3"].astype(jnp.bfloat16)
    w4_row = params["w4"].reshape(1, 16).astype(jnp.float32)   # VPU operand, f32
    b1 = params["b1"].astype(jnp.float32)
    b2 = params["b2"].astype(jnp.float32)
    b3 = params["b3"].astype(jnp.float32)
    b4 = params["b4"].reshape(1, 1).astype(jnp.float32)

    out = pl.pallas_call(
        _mlp_kernel,
        out_shape=jax.ShapeDtypeStruct((B, 1), jnp.float32),
        grid_spec=pltpu.PrefetchScalarGridSpec(
            num_scalar_prefetch=0,
            grid=grid,
            in_specs=[
                pl.BlockSpec((tile_b, D), lambda i: (i, 0)),
                _const_spec(w1.shape), _const_spec(b1.shape),
                _const_spec(w2.shape), _const_spec(b2.shape),
                _const_spec(w3.shape), _const_spec(b3.shape),
                _const_spec(w4_row.shape), _const_spec(b4.shape),
            ],
            out_specs=pl.BlockSpec((tile_b, 1), lambda i: (i, 0)),
        ),
        compiler_params=pltpu.CompilerParams(
            dimension_semantics=("parallel",),
            # 8k-row f32 x tile (4 MiB) double-buffered + f32 intermediates
            # ~= 15 MiB peak: give explicit headroom over v5e's 16 MiB default.
            vmem_limit_bytes=32 * 1024 * 1024),
    )(x, w1, b1, w2, b2, w3, b3, w4_row, b4)

    return out


def init_params(key):
    """Deterministic init mimicking torch.nn.Linear default U(-1/sqrt(fan_in), +)."""
    dims = [(128, 64), (64, 32), (32, 16), (16, 1)]
    params = {}
    for idx, (fan_in, fan_out) in enumerate(dims, start=1):
        key, kw, kb = jax.random.split(key, 3)
        bound = 1.0 / jnp.sqrt(fan_in)
        # stored as [in, out] so the kernel computes x @ W
        params[f"w{idx}"] = jax.random.uniform(
            kw, (fan_in, fan_out), jnp.float32, -bound, bound)
        params[f"b{idx}"] = jax.random.uniform(
            kb, (1, fan_out), jnp.float32, -bound, bound)
    return params


def reference_forward_f32(x, params):
    h = x
    for idx in range(1, 5):
        h = h @ params[f"w{idx}"] + params[f"b{idx}"]
        if idx < 4:
            h = jnp.maximum(h, 0.0)
    return h


def reference_forward_matched(x, params):
    """Same math as the kernel (bf16 MXU feeds, f32 accumulation / elementwise)."""
    h = x.astype(jnp.bfloat16)
    for idx in (1, 2, 3):
        w = params[f"w{idx}"].astype(jnp.bfloat16)
        h = jnp.dot(h, w, preferred_element_type=jnp.float32) + params[f"b{idx}"]
        h = jnp.maximum(h, 0.0)
        if idx < 3:
            h = h.astype(jnp.bfloat16)
    return (jnp.sum(h * params["w4"].reshape(1, 16), axis=-1, keepdims=True)
            + params["b4"].reshape(1, 1))


if __name__ == "__main__":
    key = jax.random.PRNGKey(0)
    key, kx = jax.random.split(key)
    params = init_params(key)

    # Small demo batch (single tile).
    B = 8
    x = jax.random.normal(kx, (B, 128), jnp.float32)
    out = jax.block_until_ready(regressor_forward(x, params))
    assert out.shape == (B, 1), out.shape
    ref_m = reference_forward_matched(x, params)
    ref_f = reference_forward_f32(x, params)
    assert jnp.allclose(out, ref_m, atol=1e-2, rtol=1e-2), float(
        jnp.max(jnp.abs(out - ref_m)))
    assert jnp.allclose(out, ref_f, atol=1e-1, rtol=1e-1), float(
        jnp.max(jnp.abs(out - ref_f)))

    # Ragged batch: multi-step grid + partial last block (no padding pass).
    key, kx2 = jax.random.split(key)
    B2 = 2000
    x2 = jax.random.normal(kx2, (B2, 128), jnp.float32)
    out2 = jax.block_until_ready(regressor_forward(x2, params, tile_b=512))
    assert out2.shape == (B2, 1), out2.shape
    ref2 = reference_forward_matched(x2, params)
    assert jnp.allclose(out2, ref2, atol=1e-2, rtol=1e-2), float(
        jnp.max(jnp.abs(out2 - ref2)))

    # Default tile selection path (tile_b capped to keep >= ~4 grid steps).
    out3 = jax.block_until_ready(regressor_forward(x2, params))
    assert out3.shape == (B2, 1), out3.shape
    assert jnp.allclose(out3, ref2, atol=1e-2, rtol=1e-2), float(
        jnp.max(jnp.abs(out3 - ref2)))

    print("KERNEL_OK")
</pallas_src>

<mosaic_0001>
module attributes {stable_mosaic.version = 11 : i64} {
  func.func @_mlp_kernel(%arg0: i32, %arg1: memref<8x128xf32, #tpu.memory_space<vmem>>, %arg2: memref<128x64xbf16, #tpu.memory_space<vmem>>, %arg3: memref<1x64xf32, #tpu.memory_space<vmem>>, %arg4: memref<64x32xbf16, #tpu.memory_space<vmem>>, %arg5: memref<1x32xf32, #tpu.memory_space<vmem>>, %arg6: memref<32x16xbf16, #tpu.memory_space<vmem>>, %arg7: memref<1x16xf32, #tpu.memory_space<vmem>>, %arg8: memref<1x16xf32, #tpu.memory_space<vmem>>, %arg9: memref<1x1xf32, #tpu.memory_space<vmem>>, %arg10: memref<8x1xf32, #tpu.memory_space<vmem>>) attributes {dimension_semantics = [#tpu.dimension_semantics<parallel>], iteration_bounds = array<i64: 1>, scalar_prefetch = 0 : i64, scratch_operands = 0 : i64, tpu.core_type = #tpu.core_type<tc>, window_params = [{transform_indices = @transform_0, window_bounds = array<i64: 8, 128>}, {pipeline_mode = #tpu.pipeline_mode<synchronous>, transform_indices = @transform_1, window_bounds = array<i64: 128, 64>}, {pipeline_mode = #tpu.pipeline_mode<synchronous>, transform_indices = @transform_2, window_bounds = array<i64: 1, 64>}, {pipeline_mode = #tpu.pipeline_mode<synchronous>, transform_indices = @transform_3, window_bounds = array<i64: 64, 32>}, {pipeline_mode = #tpu.pipeline_mode<synchronous>, transform_indices = @transform_4, window_bounds = array<i64: 1, 32>}, {pipeline_mode = #tpu.pipeline_mode<synchronous>, transform_indices = @transform_5, window_bounds = array<i64: 32, 16>}, {pipeline_mode = #tpu.pipeline_mode<synchronous>, transform_indices = @transform_6, window_bounds = array<i64: 1, 16>}, {pipeline_mode = #tpu.pipeline_mode<synchronous>, transform_indices = @transform_7, window_bounds = array<i64: 1, 16>}, {pipeline_mode = #tpu.pipeline_mode<synchronous>, transform_indices = @transform_8, window_bounds = array<i64: 1, 1>}, {transform_indices = @transform_9, window_bounds = array<i64: 8, 1>}]} {
    %c0 = arith.constant 0 : index
    %c0_0 = arith.constant 0 : index
    %0 = vector.load %arg1[%c0, %c0_0] : memref<8x128xf32, #tpu.memory_space<vmem>>, vector<8x128xf32>
    %1 = arith.truncf %0 : vector<8x128xf32> to vector<8x128xbf16>
    %c0_1 = arith.constant 0 : index
    %c0_2 = arith.constant 0 : index
    %2 = vector.load %arg2[%c0_1, %c0_2] : memref<128x64xbf16, #tpu.memory_space<vmem>>, vector<128x64xbf16>
    %cst = arith.constant dense<0.000000e+00> : vector<8x64xf32>
    %3 = tpu.matmul %1, %2, %cst {dimension_numbers = #tpu.dot_dimension_numbers<[1], [0], [0], [1], [0, 0, 1, 1], [], []>} : vector<8x128xbf16>, vector<128x64xbf16>, vector<8x64xf32> -> vector<8x64xf32>
    %c0_3 = arith.constant 0 : index
    %c0_4 = arith.constant 0 : index
    %4 = vector.load %arg3[%c0_3, %c0_4] : memref<1x64xf32, #tpu.memory_space<vmem>>, vector<1x64xf32>
    %5 = vector.broadcast %4 : vector<1x64xf32> to vector<8x64xf32>
    %6 = arith.addf %3, %5 : vector<8x64xf32>
    %cst_5 = arith.constant 0.000000e+00 : f32
    %7 = vector.broadcast %cst_5 : f32 to vector<8x64xf32>
    %8 = arith.maximumf %6, %7 : vector<8x64xf32>
    %9 = arith.truncf %8 : vector<8x64xf32> to vector<8x64xbf16>
    %c0_6 = arith.constant 0 : index
    %c0_7 = arith.constant 0 : index
    %10 = vector.load %arg4[%c0_6, %c0_7] : memref<64x32xbf16, #tpu.memory_space<vmem>>, vector<64x32xbf16>
    %cst_8 = arith.constant dense<0.000000e+00> : vector<8x32xf32>
    %11 = tpu.matmul %9, %10, %cst_8 {dimension_numbers = #tpu.dot_dimension_numbers<[1], [0], [0], [1], [0, 0, 1, 1], [], []>} : vector<8x64xbf16>, vector<64x32xbf16>, vector<8x32xf32> -> vector<8x32xf32>
    %c0_9 = arith.constant 0 : index
    %c0_10 = arith.constant 0 : index
    %12 = vector.load %arg5[%c0_9, %c0_10] : memref<1x32xf32, #tpu.memory_space<vmem>>, vector<1x32xf32>
    %13 = vector.broadcast %12 : vector<1x32xf32> to vector<8x32xf32>
    %14 = arith.addf %11, %13 : vector<8x32xf32>
    %cst_11 = arith.constant 0.000000e+00 : f32
    %15 = vector.broadcast %cst_11 : f32 to vector<8x32xf32>
    %16 = arith.maximumf %14, %15 : vector<8x32xf32>
    %17 = arith.truncf %16 : vector<8x32xf32> to vector<8x32xbf16>
    %c0_12 = arith.constant 0 : index
    %c0_13 = arith.constant 0 : index
    %18 = vector.load %arg6[%c0_12, %c0_13] : memref<32x16xbf16, #tpu.memory_space<vmem>>, vector<32x16xbf16>
    %cst_14 = arith.constant dense<0.000000e+00> : vector<8x16xf32>
    %19 = tpu.matmul %17, %18, %cst_14 {dimension_numbers = #tpu.dot_dimension_numbers<[1], [0], [0], [1], [0, 0, 1, 1], [], []>} : vector<8x32xbf16>, vector<32x16xbf16>, vector<8x16xf32> -> vector<8x16xf32>
    %c0_15 = arith.constant 0 : index
    %c0_16 = arith.constant 0 : index
    %20 = vector.load %arg7[%c0_15, %c0_16] : memref<1x16xf32, #tpu.memory_space<vmem>>, vector<1x16xf32>
    %21 = vector.broadcast %20 : vector<1x16xf32> to vector<8x16xf32>
    %22 = arith.addf %19, %21 : vector<8x16xf32>
    %cst_17 = arith.constant 0.000000e+00 : f32
    %23 = vector.broadcast %cst_17 : f32 to vector<8x16xf32>
    %24 = arith.maximumf %22, %23 : vector<8x16xf32>
    %c0_18 = arith.constant 0 : index
    %c0_19 = arith.constant 0 : index
    %25 = vector.load %arg8[%c0_18, %c0_19] : memref<1x16xf32, #tpu.memory_space<vmem>>, vector<1x16xf32>
    %26 = vector.broadcast %25 : vector<1x16xf32> to vector<8x16xf32>
    %27 = arith.mulf %24, %26 : vector<8x16xf32>
    %cst_20 = arith.constant dense<0.000000e+00> : vector<8xf32>
    %28 = vector.multi_reduction <add>, %27, %cst_20 [1] : vector<8x16xf32> to vector<8xf32>
    %29 = vector.shape_cast %28 : vector<8xf32> to vector<8x1xf32>
    %c0_21 = arith.constant 0 : index
    %c0_22 = arith.constant 0 : index
    %30 = vector.load %arg9[%c0_21, %c0_22] : memref<1x1xf32, #tpu.memory_space<vmem>>, vector<1x1xf32>
    %31 = vector.broadcast %30 : vector<1x1xf32> to vector<8x1xf32>
    %32 = arith.addf %29, %31 : vector<8x1xf32>
    %c0_23 = arith.constant 0 : index
    %c0_24 = arith.constant 0 : index
    %33 = vector.load %arg10[%c0_23, %c0_24] : memref<8x1xf32, #tpu.memory_space<vmem>>, vector<8x1xf32>
    tpu.vector_store %arg10[%c0_23, %c0_24], %32 {strides = array<i32>} : memref<8x1xf32, #tpu.memory_space<vmem>>, vector<8x1xf32>,
    return
  }
  func.func @transform_0(%arg0: i32) -> (i32, i32) {
    %c0_i32 = arith.constant 0 : i32
    %c0_i32_0 = arith.constant 0 : i32
    return %arg0, %c0_i32 : i32, i32
  }
  func.func @transform_1(%arg0: i32) -> (i32, i32) {
    %c0_i32 = arith.constant 0 : i32
    %c0_i32_0 = arith.constant 0 : i32
    %c0_i32_1 = arith.constant 0 : i32
    return %c0_i32, %c0_i32_0 : i32, i32
  }
  func.func @transform_2(%arg0: i32) -> (i32, i32) {
    %c0_i32 = arith.constant 0 : i32
    %c0_i32_0 = arith.constant 0 : i32
    %c0_i32_1 = arith.constant 0 : i32
    return %c0_i32, %c0_i32_0 : i32, i32
  }
  func.func @transform_3(%arg0: i32) -> (i32, i32) {
    %c0_i32 = arith.constant 0 : i32
    %c0_i32_0 = arith.constant 0 : i32
    %c0_i32_1 = arith.constant 0 : i32
    return %c0_i32, %c0_i32_0 : i32, i32
  }
  func.func @transform_4(%arg0: i32) -> (i32, i32) {
    %c0_i32 = arith.constant 0 : i32
    %c0_i32_0 = arith.constant 0 : i32
    %c0_i32_1 = arith.constant 0 : i32
    return %c0_i32, %c0_i32_0 : i32, i32
  }
  func.func @transform_5(%arg0: i32) -> (i32, i32) {
    %c0_i32 = arith.constant 0 : i32
    %c0_i32_0 = arith.constant 0 : i32
    %c0_i32_1 = arith.constant 0 : i32
    return %c0_i32, %c0_i32_0 : i32, i32
  }
  func.func @transform_6(%arg0: i32) -> (i32, i32) {
    %c0_i32 = arith.constant 0 : i32
    %c0_i32_0 = arith.constant 0 : i32
    %c0_i32_1 = arith.constant 0 : i32
    return %c0_i32, %c0_i32_0 : i32, i32
  }
  func.func @transform_7(%arg0: i32) -> (i32, i32) {
    %c0_i32 = arith.constant 0 : i32
    %c0_i32_0 = arith.constant 0 : i32
    %c0_i32_1 = arith.constant 0 : i32
    return %c0_i32, %c0_i32_0 : i32, i32
  }
  func.func @transform_8(%arg0: i32) -> (i32, i32) {
    %c0_i32 = arith.constant 0 : i32
    %c0_i32_0 = arith.constant 0 : i32
    %c0_i32_1 = arith.constant 0 : i32
    return %c0_i32, %c0_i32_0 : i32, i32
  }
  func.func @transform_9(%arg0: i32) -> (i32, i32) {
    %c0_i32 = arith.constant 0 : i32
    %c0_i32_0 = arith.constant 0 : i32
    return %arg0, %c0_i32 : i32, i32
  }
}

</mosaic_0001>

<llo_original>
// kernel: tpu_custom_call.1
$region0: #{tpu_custom_call.1}
  #allocation0 [shape = 'u32[]', space=smem, size = 0x4, offset = 0x4, fixed_abs, tag = 'smem constant byte address 0x4 - core index']
  #allocation1 [shape = 'u32[72,128]{1,0:T(1,128)}', space=vmem, size = 0x9000, scoped, tag = 'internal scratch']
  #allocation2 [shape = 'f32[1,1]{1,0:T(1,128)S(1)}', space=vmem, size = 0x200, scoped, tag = 'scoped memory for tpu_custom_call.1']
  %s0 = inlined_call_operand.vmem [shape: f32[8,128], index: 0, kind: input, shape index: {}]
  %s1 = inlined_call_operand.vmem [shape: bf16[128,64], index: 1, kind: input, shape index: {}]
  %s2 = inlined_call_operand.vmem [shape: f32[1,64], index: 2, kind: input, shape index: {}]
  %s3 = inlined_call_operand.vmem [shape: bf16[64,32], index: 3, kind: input, shape index: {}]
  %s4 = inlined_call_operand.vmem [shape: f32[1,32], index: 4, kind: input, shape index: {}]
  %s5 = inlined_call_operand.vmem [shape: bf16[32,16], index: 5, kind: input, shape index: {}]
  %s6 = inlined_call_operand.vmem [shape: f32[1,16], index: 6, kind: input, shape index: {}]
  %s7 = inlined_call_operand.vmem [shape: f32[1,16], index: 7, kind: input, shape index: {}]
  %s8 = inlined_call_operand.<no memory space> [shape: f32[1,1], index: 8, kind: input, shape index: {}]
  %s9 = inlined_call_operand.vmem [shape: f32[8,1], index: 9, kind: output, shape index: {}]
  %s10 = sld [smem:[#allocation0]]
  $region46: #{tpu_custom_call.1} parent=0
    _
  %s12 = ssub.s32 1, %s10
  %s13 = scalar_select 0, %s12, %s10
  %v14 = vstv %s8
  %15 = vst [vmem:[#allocation2] sm:$0x1] %v14
  // Predicated region
  $region2: #{tpu_custom_call.1} parent=0 // pred_check
    _
  $region3: #{tpu_custom_call.1} parent=0 // pred_check_branch
    %17 = sbr.rel (0) target = $region5
  $region4: #{tpu_custom_call.1} parent=0 // pred_region
    _
  $region5: #{tpu_custom_call.1} parent=0 // pred_fallthru
    _
  // Predicated region
  $region6: #{tpu_custom_call.1} parent=0 // pred_check
    _
  $region7: #{tpu_custom_call.1} parent=0 // pred_check_branch
    %19 = sbr.rel (0) target = $region9
  $region8: #{tpu_custom_call.1} parent=0 // pred_region
    _
  $region9: #{tpu_custom_call.1} parent=0 // pred_fallthru
    _
  // Predicated region
  $region10: #{tpu_custom_call.1} parent=0 // pred_check
    _
  $region11: #{tpu_custom_call.1} parent=0 // pred_check_branch
    %21 = sbr.rel (0) target = $region13
  $region12: #{tpu_custom_call.1} parent=0 // pred_region
    _
  $region13: #{tpu_custom_call.1} parent=0 // pred_fallthru
    _
  // Predicated region
  $region14: #{tpu_custom_call.1} parent=0 // pred_check
    _
  $region15: #{tpu_custom_call.1} parent=0 // pred_check_branch
    %23 = sbr.rel (0) target = $region17
  $region16: #{tpu_custom_call.1} parent=0 // pred_region
    _
  $region17: #{tpu_custom_call.1} parent=0 // pred_fallthru
    _
  // Predicated region
  $region18: #{tpu_custom_call.1} parent=0 // pred_check
    _
  $region19: #{tpu_custom_call.1} parent=0 // pred_check_branch
    %25 = sbr.rel (0) target = $region21
  $region20: #{tpu_custom_call.1} parent=0 // pred_region
    _
  $region21: #{tpu_custom_call.1} parent=0 // pred_fallthru
    _
  // Predicated region
  $region22: #{tpu_custom_call.1} parent=0 // pred_check
    _
  $region23: #{tpu_custom_call.1} parent=0 // pred_check_branch
    %27 = sbr.rel (0) target = $region25
  $region24: #{tpu_custom_call.1} parent=0 // pred_region
    _
  $region25: #{tpu_custom_call.1} parent=0 // pred_fallthru
    _
  // Predicated region
  $region26: #{tpu_custom_call.1} parent=0 // pred_check
    _
  $region27: #{tpu_custom_call.1} parent=0 // pred_check_branch
    %29 = sbr.rel (0) target = $region29
  $region28: #{tpu_custom_call.1} parent=0 // pred_region
    _
  $region29: #{tpu_custom_call.1} parent=0 // pred_fallthru
    _
  // Predicated region
  $region30: #{tpu_custom_call.1} parent=0 // pred_check
    _
  $region31: #{tpu_custom_call.1} parent=0 // pred_check_branch
    %31 = sbr.rel (0) target = $region33
  $region32: #{tpu_custom_call.1} parent=0 // pred_region
    _
  $region33: #{tpu_custom_call.1} parent=0 // pred_fallthru
    _
  // Predicated region
  $region34: #{tpu_custom_call.1} parent=0 // pred_check
    _
  $region35: #{tpu_custom_call.1} parent=0 // pred_check_branch
    %33 = sbr.rel (0) target = $region37
  $region36: #{tpu_custom_call.1} parent=0 // pred_region
    _
  $region37: #{tpu_custom_call.1} parent=0 // pred_fallthru
    _
  %v35 = vld [vmem:[%s0] sm:$0xff]
  %v36 = vpack.c.bf16 %v35, %v35
  %v37 = vld [vmem:[%s1] sm:$0xf]
  %v38 = vld [vmem:[%s1 + $0x4] sm:$0xf]
  %v39 = vld [vmem:[%s1 + $0x8] sm:$0xf]
  %v40 = vld [vmem:[%s1 + $0xc] sm:$0xf]
  %v41 = vld [vmem:[%s1 + $0x10] sm:$0xf]
  %v42 = vld [vmem:[%s1 + $0x14] sm:$0xf]
  %v43 = vld [vmem:[%s1 + $0x18] sm:$0xf]
  %v44 = vld [vmem:[%s1 + $0x1c] sm:$0xf]
  %v45 = vld [vmem:[%s1 + $0x20] sm:$0xf]
  %v46 = vld [vmem:[%s1 + $0x24] sm:$0xf]
  %v47 = vld [vmem:[%s1 + $0x28] sm:$0xf]
  %v48 = vld [vmem:[%s1 + $0x2c] sm:$0xf]
  %v49 = vld [vmem:[%s1 + $0x30] sm:$0xf]
  %v50 = vld [vmem:[%s1 + $0x34] sm:$0xf]
  %v51 = vld [vmem:[%s1 + $0x38] sm:$0xf]
  %v52 = vld [vmem:[%s1 + $0x3c] sm:$0xf]
  %v53 = vld [vmem:[%s2] sm:$0x1]
  %v55 = vperm.slane %v53, 0
  %v73 = vunpack.c.l.b16 %v37
  %v74 = vunpack.c.l.b16 %v38
  %v75 = vunpack.c.l.b16 %v39
  %v76 = vunpack.c.l.b16 %v40
  %v77 = vunpack.c.l.b16 %v41
  %v78 = vunpack.c.l.b16 %v42
  %v79 = vunpack.c.l.b16 %v43
  %v80 = vunpack.c.l.b16 %v44
  %v81 = vunpack.c.l.b16 %v45
  %v82 = vunpack.c.l.b16 %v46
  %v83 = vunpack.c.l.b16 %v47
  %v84 = vunpack.c.l.b16 %v48
  %v85 = vunpack.c.l.b16 %v49
  %v86 = vunpack.c.l.b16 %v50
  %v87 = vunpack.c.l.b16 %v51
  %v88 = vunpack.c.l.b16 %v52
  %v89 = vpack.c.b16 %v74, %v73
  %v90 = vpack.c.b16 %v76, %v75
  %v91 = vpack.c.b16 %v78, %v77
  %v92 = vpack.c.b16 %v80, %v79
  %v93 = vpack.c.b16 %v82, %v81
  %v94 = vpack.c.b16 %v84, %v83
  %v95 = vpack.c.b16 %v86, %v85
  %v96 = vpack.c.b16 %v88, %v87
  %105 = vmatpush.bf16.msra.mxu0 %v96
  %106 = vmatpush.bf16.msra.mxu0 %v95
  %107 = vmatpush.bf16.msra.mxu0 %v94
  %108 = vmatpush.bf16.msra.mxu0 %v93
  %109 = vmatpush.bf16.msra.mxu0 %v92
  %110 = vmatpush.bf16.msra.mxu0 %v91
  %111 = vmatpush.bf16.msra.mxu0 %v90
  %112 = vmatpush.bf16.msra.mxu0 %v89
  %113 = vmatmul.bf16.gmra.mxu0 %v36
  %v114 = vpop.f32.mrf.mxu0
  %v115 = vadd.f32 %v55, %v114
  %v116 = vpop.f32.mrf.mxu0
  %117 = vdwg.mxu0
  %v118 = vmax.f32 %v115, 0.0
  %v119 = vpack.c.bf16 %v118, %v118
  %v120 = vld [vmem:[%s3] sm:$0xf]
  %v121 = vld [vmem:[%s3 + $0x4] sm:$0xf]
  %v122 = vld [vmem:[%s3 + $0x8] sm:$0xf]
  %v123 = vld [vmem:[%s3 + $0xc] sm:$0xf]
  %v124 = vld [vmem:[%s3 + $0x10] sm:$0xf]
  %v125 = vld [vmem:[%s3 + $0x14] sm:$0xf]
  %v126 = vld [vmem:[%s3 + $0x18] sm:$0xf]
  %v127 = vld [vmem:[%s3 + $0x1c] sm:$0xf]
  %v128 = vld [vmem:[%s4] sm:$0x1]
  %v130 = vperm.slane %v128, 0
  %v140 = vunpack.c.l.b16 %v120
  %v141 = vunpack.c.l.b16 %v121
  %v142 = vunpack.c.l.b16 %v122
  %v143 = vunpack.c.l.b16 %v123
  %v144 = vunpack.c.l.b16 %v124
  %v145 = vunpack.c.l.b16 %v125
  %v146 = vunpack.c.l.b16 %v126
  %v147 = vunpack.c.l.b16 %v127
  %v148 = vpack.c.b16 %v141, %v140
  %v149 = vpack.c.b16 %v143, %v142
  %v150 = vpack.c.b16 %v145, %v144
  %v151 = vpack.c.b16 %v147, %v146
  %vm156 = vcmask 523264
  %v158 = vsel %vm156, %v119, 0
  %160 = vmatpush.bf16.msra.mxu0 0
  %161 = vmatpush.bf16.msra.mxu0 0
  %162 = vmatpush.bf16.msra.mxu0 0
  %163 = vmatpush.bf16.msra.mxu0 0
  %164 = vmatpush.bf16.msra.mxu0 %v151
  %165 = vmatpush.bf16.msra.mxu0 %v150
  %166 = vmatpush.bf16.msra.mxu0 %v149
  %167 = vmatpush.bf16.msra.mxu0 %v148
  %168 = vmatmul.bf16.gmra.mxu0 %v158
  %v169 = vpop.f32.mrf.mxu0
  %v170 = vadd.f32 %v130, %v169
  %v171 = vpop.f32.mrf.mxu0
  %172 = vdwg.mxu0
  %v173 = vmax.f32 %v170, 0.0
  %v174 = vpack.c.bf16 %v173, %v173
  %v175 = vld [vmem:[%s5] sm:$0xf]
  %v176 = vld [vmem:[%s5 + $0x4] sm:$0xf]
  %v177 = vld [vmem:[%s5 + $0x8] sm:$0xf]
  %v178 = vld [vmem:[%s5 + $0xc] sm:$0xf]
  %v179 = vld [vmem:[%s6] sm:$0x1]
  %v181 = vperm.slane %v179, 0
  %v187 = vunpack.c.l.b16 %v175
  %v188 = vunpack.c.l.b16 %v176
  %v189 = vunpack.c.l.b16 %v177
  %v190 = vunpack.c.l.b16 %v178
  %v191 = vpack.c.b16 %v188, %v187
  %v192 = vpack.c.b16 %v190, %v189
  %vm195 = vcmask 261120
  %v197 = vsel %vm195, %v174, 0
  %199 = vmatpush.bf16.msra.mxu0 0
  %200 = vmatpush.bf16.msra.mxu0 0
  %201 = vmatpush.bf16.msra.mxu0 0
  %202 = vmatpush.bf16.msra.mxu0 0
  %203 = vmatpush.bf16.msra.mxu0 0
  %204 = vmatpush.bf16.msra.mxu0 0
  %205 = vmatpush.bf16.msra.mxu0 %v192
  %206 = vmatpush.bf16.msra.mxu0 %v191
  %207 = vmatmul.bf16.gmra.mxu0 %v197
  %v208 = vpop.f32.mrf.mxu0
  %v209 = vadd.f32 %v181, %v208
  %v210 = vpop.f32.mrf.mxu0
  %211 = vdwg.mxu0
  %v212 = vmax.f32 %v209, 0.0
  %v213 = vld [vmem:[%s7] sm:$0x1]
  %v215 = vperm.slane %v213, 0
  %v217 = vmul.f32 %v212, %v215
  %vm218 = vcmask 130048
  %v219 = vsel %vm218, %v217, 0.0
  %220 = vadd.xlane.f32.xlu0 %v219
  %v221 = vpop.xlane.xlu0 %220
  %v222 = vld [vmem:[#allocation2] sm:$0x1]
  %v224 = vperm.slane %v222, 0
  %v226 = vadd.f32 %v221, %v224
  %vm227 = vcmask 7168
  %228 = vst.msk [vmem:[%s9] sm:$0xff] %vm227, %v226
  // Predicated region
  $region38: #{tpu_custom_call.1} parent=0 // pred_check
    _
  $region39: #{tpu_custom_call.1} parent=0 // pred_check_branch
    %230 = sbr.rel (0) target = $region41
  $region40: #{tpu_custom_call.1} parent=0 // pred_region
    _
  $region41: #{tpu_custom_call.1} parent=0 // pred_fallthru
    _
  // Predicated region
  $region42: #{tpu_custom_call.1} parent=0 // pred_check
    _
  $region43: #{tpu_custom_call.1} parent=0 // pred_check_branch
    %232 = sbr.rel (0) target = $region45
  $region44: #{tpu_custom_call.1} parent=0 // pred_region
    _
  $region45: #{tpu_custom_call.1} parent=0 // pred_fallthru
    _

</llo_original>
